<compile_context>
chip_gen: v5e
topology: v5e:2x2
jax: 0.10.0
libtpu: 0.0.40
codegen_flags: <defaults>
</compile_context>

<pallas_src>
import jax
import jax.numpy as jnp
from jax.experimental import pallas as pl
from jax.experimental.pallas import tpu as pltpu


def _round_up(a, b):
    return ((a + b - 1) // b) * b


def _lane_fold(c):
    # Widen the effective last dim to a multiple of 128 (target ~512 lanes) so
    # stores are full-width. Falls back to 1 for awkward C (full-dim block).
    if c % 128 == 0:
        return max(1, 512 // c)
    if 128 % c == 0:
        return 512 // c
    return 1


def _rsnorm_train_kernel(x_ref, mean_ref, scale_ref, out_ref, psum_ref):
    xf = x_ref[...].astype(jnp.float32)                       # (tm, Cp) in-register f32
    out_ref[...] = ((xf - mean_ref[...]) * scale_ref[...]).astype(out_ref.dtype)
    # Per-tile partial column sum; broadcast to 8 sublanes so the output block
    # keeps an (8, 128)-friendly shape. Host reduces the tiny partials.
    s = jnp.sum(xf, axis=0, keepdims=True)                    # (1, Cp)
    psum_ref[...] = jnp.broadcast_to(s, psum_ref.shape)       # (8, Cp)


def _rsnorm_eval_kernel(x_ref, mean_ref, scale_ref, out_ref):
    xf = x_ref[...].astype(jnp.float32)
    out_ref[...] = ((xf - mean_ref[...]) * scale_ref[...]).astype(out_ref.dtype)


def rsnorm_forward(x, t, running_mean, running_var, *, eps=1e-5, training=True):
    """Replicates RSNorm.forward. Returns (normalized_x, new_t, new_mean, new_var).

    In eval mode (training=False) the buffers are returned unchanged.
    """
    orig_shape = x.shape
    C = orig_shape[-1]
    x2 = x.reshape(-1, C)
    M = x2.shape[0]
    # NOTE: output kept in the input dtype for bandwidth (torch would promote
    # half inputs to f32 via type promotion with the f32 buffers).
    out_dtype = x.dtype

    # ---- lane-dense packing: (M, C) -> (Mp, lane_fold * C) -----------------
    lane_fold = _lane_fold(C)
    Cp = lane_fold * C

    # ---- row tiling: ~2 MiB (f32) per block, rows multiple of 8 ------------
    target_block_bytes = 2 * 1024 * 1024
    tm = max(8, min(2048, (target_block_bytes // (Cp * 4)) // 8 * 8))
    Mp = -(-M // lane_fold)                 # packed rows needed
    tm = min(tm, _round_up(Mp, 8))          # don't over-pad tiny inputs
    Mp_pad = _round_up(Mp, tm)
    num_tiles = Mp_pad // tm
    M_pad = Mp_pad * lane_fold

    if M_pad > M:
        x2 = jnp.pad(x2, ((0, M_pad - M), (0, 0)))   # zero rows: no effect on colsum
    x_packed = x2.reshape(Mp_pad, Cp)

    # ---- hoist sqrt / clamp / reciprocal out of the kernel ((C,)-sized) ----
    mean_f32 = running_mean.astype(jnp.float32)
    var_f32 = running_var.astype(jnp.float32)
    inv_denom = 1.0 / jnp.maximum(jnp.sqrt(var_f32), jnp.float32(eps))
    mean_p = jnp.tile(mean_f32, (lane_fold,)).reshape(1, Cp)
    scale_p = jnp.tile(inv_denom, (lane_fold,)).reshape(1, Cp)

    x_spec = pl.BlockSpec((tm, Cp), lambda i: (i, 0))
    vec_spec = pl.BlockSpec((1, Cp), lambda i: (0, 0))
    out_spec = pl.BlockSpec((tm, Cp), lambda i: (i, 0))

    compiler_params = pltpu.CompilerParams(
        dimension_semantics=("parallel",),          # no accumulator -> megacore OK
        vmem_limit_bytes=32 * 1024 * 1024,          # safe on v5e/v6e/v7x
    )

    if training:
        normalized_p, psum = pl.pallas_call(
            _rsnorm_train_kernel,
            out_shape=(
                jax.ShapeDtypeStruct((Mp_pad, Cp), out_dtype),
                jax.ShapeDtypeStruct((num_tiles * 8, Cp), jnp.float32),
            ),
            grid_spec=pltpu.PrefetchScalarGridSpec(
                num_scalar_prefetch=0,
                grid=(num_tiles,),
                in_specs=[x_spec, vec_spec, vec_spec],
                out_specs=[
                    out_spec,
                    pl.BlockSpec((8, Cp), lambda i: (i, 0)),   # per-tile partial sums
                ],
            ),
            compiler_params=compiler_params,
        )(x_packed, mean_p, scale_p)
    else:
        normalized_p = pl.pallas_call(
            _rsnorm_eval_kernel,
            out_shape=jax.ShapeDtypeStruct((Mp_pad, Cp), out_dtype),
            grid_spec=pltpu.PrefetchScalarGridSpec(
                num_scalar_prefetch=0,
                grid=(num_tiles,),
                in_specs=[x_spec, vec_spec, vec_spec],
                out_specs=out_spec,
            ),
            compiler_params=compiler_params,
        )(x_packed, mean_p, scale_p)

    normalized = normalized_p.reshape(M_pad, C)[:M].reshape(orig_shape)

    if not training:
        return normalized, t, running_mean, running_var

    # ---- running-stat bookkeeping (cheap (C,)-sized glue, plain JAX) -------
    colsum_packed = jnp.sum(psum.reshape(num_tiles, 8, Cp)[:, 0, :], axis=0)   # (Cp,)
    colsum = jnp.sum(colsum_packed.reshape(lane_fold, C), axis=0)              # (C,)
    time = jnp.asarray(t, jnp.float32)               # value read before increment
    new_obs_mean = colsum / jnp.float32(M)           # reduce(x, '... c -> c', 'mean')
    delta = new_obs_mean - mean_f32
    new_t = time + 1.0
    new_mean = mean_f32 + delta / time
    new_var = (time - 1.0) / time * (var_f32 + (1.0 / time) * delta ** 2)
    return normalized, new_t, new_mean, new_var


def _reference(x, t, running_mean, running_var, eps=1e-5):
    normalized = (x - running_mean) / jnp.maximum(jnp.sqrt(running_var), eps)
    new_obs_mean = jnp.mean(x.reshape(-1, x.shape[-1]), axis=0)
    delta = new_obs_mean - running_mean
    new_mean = running_mean + delta / t
    new_var = (t - 1.0) / t * (running_var + (1.0 / t) * delta ** 2)
    return normalized, t + 1.0, new_mean, new_var


if __name__ == "__main__":
    key = jax.random.PRNGKey(0)
    B, S, C = 2, 8, 32                 # x shape (..., C); dim = 32
    x = jax.random.normal(key, (B, S, C), dtype=jnp.float32)

    # Buffers exactly as in __init__ (deterministic, no checkpoint load).
    t = jnp.float32(1.0)
    running_mean = jnp.zeros((C,), jnp.float32)
    running_var = jnp.ones((C,), jnp.float32)

    out, new_t, new_mean, new_var = rsnorm_forward(
        x, t, running_mean, running_var, eps=1e-5, training=True)
    jax.block_until_ready(out)

    ref_out, ref_t, ref_mean, ref_var = _reference(x, t, running_mean, running_var)

    assert jnp.allclose(out, ref_out, atol=1e-5, rtol=1e-5)
    assert jnp.allclose(new_t, ref_t)
    assert jnp.allclose(new_mean, ref_mean, atol=1e-5, rtol=1e-5)
    assert jnp.allclose(new_var, ref_var, atol=1e-5, rtol=1e-5)

    # Eval path (normalization only, buffers untouched, no colsum kernel work).
    out_eval, *_ = rsnorm_forward(x, t, running_mean, running_var, training=False)
    jax.block_until_ready(out_eval)
    assert jnp.allclose(out_eval, ref_out, atol=1e-5, rtol=1e-5)

    # Larger, non-multiple-of-8 row count to exercise the padded/tiled path.
    x_big = jax.random.normal(jax.random.PRNGKey(1), (3, 37, C), dtype=jnp.float32)
    out_big, _, mean_big, var_big = rsnorm_forward(
        x_big, t, running_mean, running_var, training=True)
    jax.block_until_ready(out_big)
    rb_out, _, rb_mean, rb_var = _reference(x_big, t, running_mean, running_var)
    assert jnp.allclose(out_big, rb_out, atol=1e-5, rtol=1e-5)
    assert jnp.allclose(mean_big, rb_mean, atol=1e-5, rtol=1e-5)
    assert jnp.allclose(var_big, rb_var, atol=1e-5, rtol=1e-5)

    print("KERNEL_OK")
</pallas_src>

<mosaic_0001>
module attributes {stable_mosaic.version = 11 : i64} {
  func.func @_rsnorm_train_kernel(%arg0: i32, %arg1: memref<8x512xf32, #tpu.memory_space<vmem>>, %arg2: memref<1x512xf32, #tpu.memory_space<vmem>>, %arg3: memref<1x512xf32, #tpu.memory_space<vmem>>, %arg4: memref<8x512xf32, #tpu.memory_space<vmem>>, %arg5: memref<8x512xf32, #tpu.memory_space<vmem>>) attributes {dimension_semantics = [#tpu.dimension_semantics<parallel>], iteration_bounds = array<i64: 1>, scalar_prefetch = 0 : i64, scratch_operands = 0 : i64, tpu.core_type = #tpu.core_type<tc>, window_params = [{transform_indices = @transform_0, window_bounds = array<i64: 8, 512>}, {pipeline_mode = #tpu.pipeline_mode<synchronous>, transform_indices = @transform_1, window_bounds = array<i64: 1, 512>}, {pipeline_mode = #tpu.pipeline_mode<synchronous>, transform_indices = @transform_2, window_bounds = array<i64: 1, 512>}, {transform_indices = @transform_3, window_bounds = array<i64: 8, 512>}, {transform_indices = @transform_4, window_bounds = array<i64: 8, 512>}]} {
    %c0 = arith.constant 0 : index
    %c0_0 = arith.constant 0 : index
    %0 = vector.load %arg1[%c0, %c0_0] : memref<8x512xf32, #tpu.memory_space<vmem>>, vector<8x512xf32>
    %c0_1 = arith.constant 0 : index
    %c0_2 = arith.constant 0 : index
    %1 = vector.load %arg2[%c0_1, %c0_2] : memref<1x512xf32, #tpu.memory_space<vmem>>, vector<1x512xf32>
    %2 = vector.broadcast %1 : vector<1x512xf32> to vector<8x512xf32>
    %3 = arith.subf %0, %2 : vector<8x512xf32>
    %c0_3 = arith.constant 0 : index
    %c0_4 = arith.constant 0 : index
    %4 = vector.load %arg3[%c0_3, %c0_4] : memref<1x512xf32, #tpu.memory_space<vmem>>, vector<1x512xf32>
    %5 = vector.broadcast %4 : vector<1x512xf32> to vector<8x512xf32>
    %6 = arith.mulf %3, %5 : vector<8x512xf32>
    %c0_5 = arith.constant 0 : index
    %c0_6 = arith.constant 0 : index
    %7 = vector.load %arg4[%c0_5, %c0_6] : memref<8x512xf32, #tpu.memory_space<vmem>>, vector<8x512xf32>
    tpu.vector_store %arg4[%c0_5, %c0_6], %6 {strides = array<i32>} : memref<8x512xf32, #tpu.memory_space<vmem>>, vector<8x512xf32>,
    %cst = arith.constant dense<0.000000e+00> : vector<512xf32>
    %8 = vector.multi_reduction <add>, %0, %cst [0] : vector<8x512xf32> to vector<512xf32>
    %9 = vector.shape_cast %8 : vector<512xf32> to vector<1x512xf32>
    %10 = vector.shape_cast %9 : vector<1x512xf32> to vector<1x512xf32>
    %11 = vector.broadcast %10 : vector<1x512xf32> to vector<8x512xf32>
    %c0_7 = arith.constant 0 : index
    %c0_8 = arith.constant 0 : index
    %12 = vector.load %arg5[%c0_7, %c0_8] : memref<8x512xf32, #tpu.memory_space<vmem>>, vector<8x512xf32>
    tpu.vector_store %arg5[%c0_7, %c0_8], %11 {strides = array<i32>} : memref<8x512xf32, #tpu.memory_space<vmem>>, vector<8x512xf32>,
    return
  }
  func.func @transform_0(%arg0: i32) -> (i32, i32) {
    %c0_i32 = arith.constant 0 : i32
    %c0_i32_0 = arith.constant 0 : i32
    return %arg0, %c0_i32 : i32, i32
  }
  func.func @transform_1(%arg0: i32) -> (i32, i32) {
    %c0_i32 = arith.constant 0 : i32
    %c0_i32_0 = arith.constant 0 : i32
    %c0_i32_1 = arith.constant 0 : i32
    return %c0_i32, %c0_i32_0 : i32, i32
  }
  func.func @transform_2(%arg0: i32) -> (i32, i32) {
    %c0_i32 = arith.constant 0 : i32
    %c0_i32_0 = arith.constant 0 : i32
    %c0_i32_1 = arith.constant 0 : i32
    return %c0_i32, %c0_i32_0 : i32, i32
  }
  func.func @transform_3(%arg0: i32) -> (i32, i32) {
    %c0_i32 = arith.constant 0 : i32
    %c0_i32_0 = arith.constant 0 : i32
    return %arg0, %c0_i32 : i32, i32
  }
  func.func @transform_4(%arg0: i32) -> (i32, i32) {
    %c0_i32 = arith.constant 0 : i32
    %c0_i32_0 = arith.constant 0 : i32
    return %arg0, %c0_i32 : i32, i32
  }
}

</mosaic_0001>

<llo_original>
// kernel: tpu_custom_call.1
$region0: #{tpu_custom_call.1}
  #allocation0 [shape = 'u32[]', space=smem, size = 0x4, offset = 0x4, fixed_abs, tag = 'smem constant byte address 0x4 - core index']
  #allocation1 [shape = 'u32[72,128]{1,0:T(1,128)}', space=vmem, size = 0x9000, scoped, tag = 'internal scratch']
  %s0 = inlined_call_operand.hbm [shape: f32[8,512], index: 0, kind: input, shape index: {}]
  %s1 = inlined_call_operand.hbm [shape: f32[1,512], index: 1, kind: input, shape index: {}]
  %s2 = inlined_call_operand.hbm [shape: f32[1,512], index: 2, kind: input, shape index: {}]
  %s3 = inlined_call_operand.hbm [shape: f32[8,512], index: 3, kind: output, shape index: {0}]
  %s4 = inlined_call_operand.hbm [shape: f32[8,512], index: 4, kind: output, shape index: {1}]
  %5 = xla_tuple %s3, %s4
  %s6 = sld [smem:[#allocation0]]
  $region42: #{tpu_custom_call.1} parent=0
    _
  %s8 = ssub.s32 1, %s6
  %s9 = scalar_select 0, %s8, %s6
  $region1: #{tpu_custom_call.1} parent=0
    #allocation2 [shape = 'u8[16384]{0}', space=vmem, size = 0x4000, scoped, tag = 'input window, operand 0, single buffered']
    #allocation3 [shape = 's32[1]{0}', space=sflag, size = 0x4, scoped, tag = 'scoped memory for tpu_custom_call.1']
    #allocation4 [shape = 's32[1]{0}', space=sflag, size = 0x4, scoped, tag = 'scoped memory for tpu_custom_call.1']
    #allocation5 [shape = 'u8[2048]{0}', space=vmem, size = 0x800, scoped, tag = 'input window, operand 1, single buffered']
    #allocation6 [shape = 's32[1]{0}', space=sflag, size = 0x4, scoped, tag = 'scoped memory for tpu_custom_call.1']
    #allocation7 [shape = 'u8[2048]{0}', space=vmem, size = 0x800, scoped, tag = 'input window, operand 2, single buffered']
    #allocation8 [shape = 'u8[16384]{0}', space=vmem, size = 0x4000, scoped, tag = 'output window, operand 0, single buffered']
    #allocation9 [shape = 'u8[16384]{0}', space=vmem, size = 0x4000, scoped, tag = 'output window, operand 1, single buffered']
    #allocation10 [shape = 's32[1]{0}', space=sflag, size = 0x4, scoped, tag = 'scoped memory for tpu_custom_call.1']
    %10 = vsyncpa [#allocation3], 0
    %11 = vsyncpa [#allocation6], 0
    %12 = vsyncpa [#allocation4], 0
    %13 = vsyncpa [#allocation10], 0
    // Predicated region
    $region2: #{tpu_custom_call.1} parent=1 // pred_check
      _
    $region3: #{tpu_custom_call.1} parent=1 // pred_check_branch
      %15 = sbr.rel (0) target = $region5
    $region4: #{tpu_custom_call.1} parent=1 // pred_region
      %17 = vsyncadd [#allocation3], 0
      %s19 = sshll.u32 %s0, 4
      %s20 = int_to_ptr.hbm [resolvable:$true] %s19
      %s21 = sshll.u32 [#allocation2], 4
      %s22 = int_to_ptr.vmem [resolvable:$true] %s21
      %24 = dma.hbm_to_vmem [thread:$0]  %s20, 512, %s22, [#allocation3]
    $region5: #{tpu_custom_call.1} parent=1 // pred_fallthru
      _
    // Predicated region
    $region6: #{tpu_custom_call.1} parent=1 // pred_check
      _
    $region7: #{tpu_custom_call.1} parent=1 // pred_check_branch
      %26 = sbr.rel (0) target = $region9
    $region8: #{tpu_custom_call.1} parent=1 // pred_region
      %28 = vsyncadd [#allocation6], 0
      %s30 = sshll.u32 %s1, 4
      %s31 = int_to_ptr.hbm [resolvable:$true] %s30
      %s32 = sshll.u32 [#allocation5], 4
      %s33 = int_to_ptr.vmem [resolvable:$true] %s32
      %35 = dma.hbm_to_vmem [thread:$0]  %s31, 64, %s33, [#allocation6]
    $region9: #{tpu_custom_call.1} parent=1 // pred_fallthru
      _
    // Predicated region
    $region10: #{tpu_custom_call.1} parent=1 // pred_check
      _
    $region11: #{tpu_custom_call.1} parent=1 // pred_check_branch
      %37 = sbr.rel (0) target = $region13
    $region12: #{tpu_custom_call.1} parent=1 // pred_region
      %39 = vsyncadd [#allocation6], 0
      %s41 = sshll.u32 %s2, 4
      %s42 = int_to_ptr.hbm [resolvable:$true] %s41
      %s43 = sshll.u32 [#allocation7], 4
      %s44 = int_to_ptr.vmem [resolvable:$true] %s43
      %46 = dma.hbm_to_vmem [thread:$0]  %s42, 64, %s44, [#allocation6]
    $region13: #{tpu_custom_call.1} parent=1 // pred_fallthru
      _
    // Predicated region
    $region14: #{tpu_custom_call.1} parent=1 // pred_check
      _
    $region15: #{tpu_custom_call.1} parent=1 // pred_check_branch
      %48 = sbr.rel (0) target = $region17
    $region16: #{tpu_custom_call.1} parent=1 // pred_region
      %50 = dma.done [#allocation3], 512
    $region17: #{tpu_custom_call.1} parent=1 // pred_fallthru
      _
    // Predicated region
    $region18: #{tpu_custom_call.1} parent=1 // pred_check
      _
    $region19: #{tpu_custom_call.1} parent=1 // pred_check_branch
      %52 = sbr.rel (0) target = $region21
    $region20: #{tpu_custom_call.1} parent=1 // pred_region
      %54 = dma.done [#allocation6], 64
    $region21: #{tpu_custom_call.1} parent=1 // pred_fallthru
      _
    // Predicated region
    $region22: #{tpu_custom_call.1} parent=1 // pred_check
      _
    $region23: #{tpu_custom_call.1} parent=1 // pred_check_branch
      %56 = sbr.rel (0) target = $region25
    $region24: #{tpu_custom_call.1} parent=1 // pred_region
      %58 = dma.done [#allocation6], 64
    $region25: #{tpu_custom_call.1} parent=1 // pred_fallthru
      _
    %v59 = vld [vmem:[#allocation2] sm:$0xff]
    %v60 = vld [vmem:[#allocation2 + $0x8] sm:$0xff]
    %v61 = vld [vmem:[#allocation2 + $0x10] sm:$0xff]
    %v62 = vld [vmem:[#allocation2 + $0x18] sm:$0xff]
    %v63 = vld [vmem:[#allocation5] sm:$0xf]
    %v65 = vperm.slane %v63, 0
    %v66 = vperm.slane %v63, 1
    %v67 = vperm.slane %v63, 2
    %v68 = vperm.slane %v63, 3
    %v73 = vsub.f32 %v59, %v65
    %v74 = vsub.f32 %v60, %v66
    %v75 = vsub.f32 %v61, %v67
    %v76 = vsub.f32 %v62, %v68
    %v77 = vld [vmem:[#allocation7] sm:$0xf]
    %v79 = vperm.slane %v77, 0
    %v80 = vperm.slane %v77, 1
    %v81 = vperm.slane %v77, 2
    %v82 = vperm.slane %v77, 3
    %v87 = vmul.f32 %v73, %v79
    %v88 = vmul.f32 %v74, %v80
    %v89 = vmul.f32 %v75, %v81
    %v90 = vmul.f32 %v76, %v82
    %91 = vst [vmem:[#allocation8] sm:$0xff] %v87
    %92 = vst [vmem:[#allocation8 + $0x8] sm:$0xff] %v88
    %93 = vst [vmem:[#allocation8 + $0x10] sm:$0xff] %v89
    %94 = vst [vmem:[#allocation8 + $0x18] sm:$0xff] %v90
    %v95 = vrot.slane %v59, 4
    %v96 = vadd.f32 %v59, %v95
    %v97 = vrot.slane %v96, 2
    %v98 = vadd.f32 %v96, %v97
    %v99 = vrot.slane %v98, 1
    %v100 = vadd.f32 %v98, %v99
    %v101 = vrot.slane %v60, 4
    %v102 = vadd.f32 %v60, %v101
    %v103 = vrot.slane %v102, 2
    %v104 = vadd.f32 %v102, %v103
    %v105 = vrot.slane %v104, 1
    %v106 = vadd.f32 %v104, %v105
    %v107 = vrot.slane %v61, 4
    %v108 = vadd.f32 %v61, %v107
    %v109 = vrot.slane %v108, 2
    %v110 = vadd.f32 %v108, %v109
    %v111 = vrot.slane %v110, 1
    %v112 = vadd.f32 %v110, %v111
    %v113 = vrot.slane %v62, 4
    %v114 = vadd.f32 %v62, %v113
    %v115 = vrot.slane %v114, 2
    %v116 = vadd.f32 %v114, %v115
    %v117 = vrot.slane %v116, 1
    %v118 = vadd.f32 %v116, %v117
    %119 = vst [vmem:[#allocation9] sm:$0xff] %v100
    %120 = vst [vmem:[#allocation9 + $0x8] sm:$0xff] %v106
    %121 = vst [vmem:[#allocation9 + $0x10] sm:$0xff] %v112
    %122 = vst [vmem:[#allocation9 + $0x18] sm:$0xff] %v118
    // Predicated region
    $region26: #{tpu_custom_call.1} parent=1 // pred_check
      _
    $region27: #{tpu_custom_call.1} parent=1 // pred_check_branch
      %124 = sbr.rel (0) target = $region29
    $region28: #{tpu_custom_call.1} parent=1 // pred_region
      %126 = vsyncadd [#allocation4], 0
      %s128 = sshll.u32 [#allocation8], 4
      %s129 = int_to_ptr.vmem [resolvable:$true] %s128
      %s130 = sshll.u32 %s3, 4
      %s131 = int_to_ptr.hbm [resolvable:$true] %s130
      %133 = dma.vmem_to_hbm [thread:$0]  %s129, 512, %s131, [#allocation4]
    $region29: #{tpu_custom_call.1} parent=1 // pred_fallthru
      _
    // Predicated region
    $region30: #{tpu_custom_call.1} parent=1 // pred_check
      _
    $region31: #{tpu_custom_call.1} parent=1 // pred_check_branch
      %135 = sbr.rel (0) target = $region33
    $region32: #{tpu_custom_call.1} parent=1 // pred_region
      %137 = vsyncadd [#allocation10], 0
      %s139 = sshll.u32 [#allocation9], 4
      %s140 = int_to_ptr.vmem [resolvable:$true] %s139
      %s141 = sshll.u32 %s4, 4
      %s142 = int_to_ptr.hbm [resolvable:$true] %s141
      %144 = dma.vmem_to_hbm [thread:$0]  %s140, 512, %s142, [#allocation10]
    $region33: #{tpu_custom_call.1} parent=1 // pred_fallthru
      _
    // Predicated region
    $region34: #{tpu_custom_call.1} parent=1 // pred_check
      _
    $region35: #{tpu_custom_call.1} parent=1 // pred_check_branch
      %146 = sbr.rel (0) target = $region37
    $region36: #{tpu_custom_call.1} parent=1 // pred_region
      %148 = dma.done [#allocation4], 512
    $region37: #{tpu_custom_call.1} parent=1 // pred_fallthru
      _
    // Predicated region
    $region38: #{tpu_custom_call.1} parent=1 // pred_check
      _
    $region39: #{tpu_custom_call.1} parent=1 // pred_check_branch
      %150 = sbr.rel (0) target = $region41
    $region40: #{tpu_custom_call.1} parent=1 // pred_region
      %152 = dma.done [#allocation10], 512
    $region41: #{tpu_custom_call.1} parent=1 // pred_fallthru
      _
    %153 = vsyncpa [#allocation3], 1
    %154 = vsyncpa [#allocation6], 1
    %155 = vsyncpa [#allocation4], 1
    %156 = vsyncpa [#allocation10], 1

</llo_original>
